<compile_context>
chip_gen: v5e
topology: v5e:2x2
jax: 0.10.0
libtpu: 0.0.40
codegen_flags: <defaults>
</compile_context>

<pallas_src>
import math

import jax
import jax.numpy as jnp
from jax.experimental import pallas as pl
from jax.experimental.pallas import tpu as pltpu

_LANE = 128
_MAX_TILE_B = 1024  # rows per grid step (multiple of 8); sized for all of v5e/v6e/v7x


def _round_up(x, m):
    return ((x + m - 1) // m) * m


def _fused_mlp_kernel(x_ref, w1_ref, b1_ref, w2_ref, b2_ref, o_ref):
    """out = relu(x @ W1_blockdiag + b1) @ W2_flat + b2   (all lane-dense).

    x_ref : (TB, C*n_feature)  bf16 rows, cells packed into lanes
    w1_ref: (C*n_feature, Hpt) bf16 block-diagonal hidden weights
    b1_ref: (1, Hpt)           f32 hidden bias, tiled per cell, zero padded
    w2_ref: (Hpt, Np)          bf16 predict weights in Flatten(1,2) row order
    b2_ref: (1, Np)            f32 predict bias, zero padded to 128 lanes
    o_ref : (TB, Np)           f32 lane-dense output block
    """
    # Layer 1: one MXU matmul; because W1 is block-diagonal, its output is
    # already the flattened (c*n_hidden + h) hidden -> Flatten(1,2) is free.
    h = jnp.dot(x_ref[...], w1_ref[...], preferred_element_type=jnp.float32)
    h = jnp.maximum(h + b1_ref[...], 0.0)            # bias + ReLU on the VPU, f32
    # Layer 2: one K = Hpt matmul (K is a multiple of 128 -> good MXU fill),
    # no serial per-cell accumulator chain.
    out = jnp.dot(h.astype(w2_ref.dtype), w2_ref[...],
                  preferred_element_type=jnp.float32)
    o_ref[...] = (out + b2_ref[...]).astype(o_ref.dtype)


def init_mlp_params(key, cell_num, n_feature, n_hidden, n_class):
    """torch.nn.Linear-style init + lane-dense bf16 kernel operands."""
    assert n_hidden == 33, (
        "predict = Linear(33 * cell_num, n_class) only matches the flattened "
        "hidden output when n_hidden == 33")
    k1, k2, k3, k4 = jax.random.split(key, 4)
    bound1 = 1.0 / math.sqrt(n_feature)
    w1 = jax.random.uniform(k1, (n_hidden, n_feature), jnp.float32, -bound1, bound1)
    b1 = jax.random.uniform(k2, (n_hidden,), jnp.float32, -bound1, bound1)
    in2 = n_hidden * cell_num
    bound2 = 1.0 / math.sqrt(in2)
    w2 = jax.random.uniform(k3, (n_class, in2), jnp.float32, -bound2, bound2)
    b2 = jax.random.uniform(k4, (n_class,), jnp.float32, -bound2, bound2)

    w1t = jnp.transpose(w1)                 # (n_feature, n_hidden)
    w2t = jnp.transpose(w2)                 # (C*n_hidden, n_class), rows = c*33 + h

    kin = cell_num * n_feature
    hpt = _round_up(cell_num * n_hidden, _LANE)   # flattened hidden width, lane padded
    np_ = _round_up(n_class, _LANE)               # class width, lane padded

    # Block-diagonal W1: cell c's features map to cell c's hidden columns.
    w1_bd = jnp.zeros((kin, hpt), jnp.float32)
    for c in range(cell_num):
        w1_bd = w1_bd.at[c * n_feature:(c + 1) * n_feature,
                         c * n_hidden:(c + 1) * n_hidden].set(w1t)
    b1_flat = (jnp.zeros((1, hpt), jnp.float32)
               .at[0, : cell_num * n_hidden].set(jnp.tile(b1, cell_num)))

    w2_flat = (jnp.zeros((hpt, np_), jnp.float32)
               .at[: cell_num * n_hidden, :n_class].set(w2t))
    b2_pad = jnp.zeros((1, np_), jnp.float32).at[0, :n_class].set(b2)

    return {
        # f32 module weights (reference)
        "w1t": w1t, "b1": b1, "w2t": w2t, "b2": b2,
        # kernel operands: bf16 MXU weights, f32 biases
        "w1_bd": w1_bd.astype(jnp.bfloat16),
        "b1_flat": b1_flat,
        "w2_flat": w2_flat.astype(jnp.bfloat16),
        "b2_pad": b2_pad,
    }


def mlp_forward(x, params):
    """Pallas MLP.forward.  x: (B, C, d0, d1, d2) -> (B, n_class)."""
    B, C = x.shape[0], x.shape[1]
    n_feature = x.shape[2] * x.shape[3] * x.shape[4]
    kin = C * n_feature
    hpt = params["w1_bd"].shape[1]
    np_ = params["w2_flat"].shape[1]
    n_class = params["b2"].shape[0]

    # Flatten(2,4) + pack cells into lanes: (B, C*n_feature); bf16 halves HBM
    # traffic and the VMEM tile footprint.
    x_flat = x.reshape(B, kin).astype(jnp.bfloat16)

    # Batch tiling: one grid step for small B, else 1024-row tiles (pad B up).
    tile_b = B if B <= _MAX_TILE_B else _MAX_TILE_B
    b_pad = _round_up(B, tile_b)
    if b_pad != B:
        x_flat = jnp.pad(x_flat, ((0, b_pad - B), (0, 0)))
    grid = (b_pad // tile_b,)

    # Weight/bias index_maps ignore the batch index -> VMEM-resident, no re-DMA.
    in_specs = [
        pl.BlockSpec((tile_b, kin), lambda i: (i, 0)),   # x tile (pipelined)
        pl.BlockSpec((kin, hpt), lambda i: (0, 0)),      # W1 block-diagonal
        pl.BlockSpec((1, hpt), lambda i: (0, 0)),        # b1
        pl.BlockSpec((hpt, np_), lambda i: (0, 0)),      # W2 flattened
        pl.BlockSpec((1, np_), lambda i: (0, 0)),        # b2
    ]
    out_spec = pl.BlockSpec((tile_b, np_), lambda i: (i, 0))

    bytes_accessed = (
        2 * b_pad * kin                      # bf16 x, read once
        + 2 * (kin * hpt + hpt * np_)        # bf16 weights, one pass
        + 4 * (hpt + np_)                    # f32 biases
        + 4 * b_pad * np_                    # f32 output
    )
    flops = 2 * b_pad * kin * hpt + 2 * b_pad * hpt * np_

    out_pad = pl.pallas_call(
        _fused_mlp_kernel,
        out_shape=jax.ShapeDtypeStruct((b_pad, np_), jnp.float32),
        grid=grid,
        in_specs=in_specs,
        out_specs=out_spec,
        compiler_params=pltpu.CompilerParams(
            dimension_semantics=("parallel",),       # v7x: shard tiles over both TCs
            vmem_limit_bytes=32 * 1024 * 1024,       # explicit, with headroom on all gens
        ),
        cost_estimate=pl.CostEstimate(
            flops=flops, transcendentals=0, bytes_accessed=bytes_accessed),
    )(x_flat, params["w1_bd"], params["b1_flat"],
      params["w2_flat"], params["b2_pad"])

    # Drop batch padding and the lane padding on the class axis.
    return out_pad[:B, :n_class]


def mlp_reference(x, params):
    """Pure-f32 plain-JAX reference of the PyTorch module."""
    B, C = x.shape[0], x.shape[1]
    n_feature = x.shape[2] * x.shape[3] * x.shape[4]
    x2 = x.reshape(B, C, n_feature)
    h = jax.nn.relu(x2 @ params["w1t"] + params["b1"])
    hf = h.reshape(B, -1)
    return hf @ params["w2t"] + params["b2"]


def mlp_reference_bf16(x, params):
    """Reference using the same bf16-quantized operands the kernel sees."""
    B = x.shape[0]
    kin = params["w1_bd"].shape[0]
    n_class = params["b2"].shape[0]
    xq = x.reshape(B, kin).astype(jnp.bfloat16).astype(jnp.float32)
    h = jax.nn.relu(xq @ params["w1_bd"].astype(jnp.float32) + params["b1_flat"])
    hq = h.astype(jnp.bfloat16).astype(jnp.float32)
    out = hq @ params["w2_flat"].astype(jnp.float32) + params["b2_pad"]
    return out[:, :n_class]


if __name__ == "__main__":
    # Small shapes consistent with the module (n_hidden must be 33 because
    # predict = Linear(33 * cell_num, n_class) consumes the flattened hidden).
    batch = 2
    cell_num = 4
    d0, d1, d2 = 2, 2, 4
    n_feature = d0 * d1 * d2   # 16
    n_hidden = 33
    n_class = 5

    key = jax.random.PRNGKey(0)
    kx, kp = jax.random.split(key)
    x = jax.random.normal(kx, (batch, cell_num, d0, d1, d2), dtype=jnp.float32)
    params = init_mlp_params(kp, cell_num, n_feature, n_hidden, n_class)

    out = jax.block_until_ready(mlp_forward(x, params))
    assert out.shape == (batch, n_class), out.shape

    # Tight check vs a reference computed with identical bf16-quantized operands.
    ref_q = mlp_reference_bf16(x, params)
    assert jnp.allclose(out, ref_q, atol=1e-4, rtol=1e-4), "mismatch vs bf16-consistent reference"

    # Loose semantic check vs the pure-f32 module (bf16 rounding tolerance).
    ref_f32 = mlp_reference(x, params)
    assert jnp.allclose(out, ref_f32, atol=5e-2, rtol=5e-2), "mismatch vs f32 reference"

    print("KERNEL_OK")
</pallas_src>

<mosaic_0001>
module attributes {stable_mosaic.version = 11 : i64} {
  func.func @_fused_mlp_kernel(%arg0: i32, %arg1: memref<2x64xbf16, #tpu.memory_space<vmem>>, %arg2: memref<64x256xbf16, #tpu.memory_space<vmem>>, %arg3: memref<1x256xf32, #tpu.memory_space<vmem>>, %arg4: memref<256x128xbf16, #tpu.memory_space<vmem>>, %arg5: memref<1x128xf32, #tpu.memory_space<vmem>>, %arg6: memref<2x128xf32, #tpu.memory_space<vmem>>) attributes {dimension_semantics = [#tpu.dimension_semantics<parallel>], iteration_bounds = array<i64: 1>, scalar_prefetch = 0 : i64, scratch_operands = 0 : i64, tpu.core_type = #tpu.core_type<tc>, window_params = [{transform_indices = @transform_0, window_bounds = array<i64: 2, 64>}, {pipeline_mode = #tpu.pipeline_mode<synchronous>, transform_indices = @transform_1, window_bounds = array<i64: 64, 256>}, {pipeline_mode = #tpu.pipeline_mode<synchronous>, transform_indices = @transform_2, window_bounds = array<i64: 1, 256>}, {pipeline_mode = #tpu.pipeline_mode<synchronous>, transform_indices = @transform_3, window_bounds = array<i64: 256, 128>}, {pipeline_mode = #tpu.pipeline_mode<synchronous>, transform_indices = @transform_4, window_bounds = array<i64: 1, 128>}, {transform_indices = @transform_5, window_bounds = array<i64: 2, 128>}]} {
    %c0 = arith.constant 0 : index
    %c0_0 = arith.constant 0 : index
    %0 = vector.load %arg1[%c0, %c0_0] : memref<2x64xbf16, #tpu.memory_space<vmem>>, vector<2x64xbf16>
    %c0_1 = arith.constant 0 : index
    %c0_2 = arith.constant 0 : index
    %1 = vector.load %arg2[%c0_1, %c0_2] : memref<64x256xbf16, #tpu.memory_space<vmem>>, vector<64x256xbf16>
    %cst = arith.constant dense<0.000000e+00> : vector<2x256xf32>
    %2 = tpu.matmul %0, %1, %cst {dimension_numbers = #tpu.dot_dimension_numbers<[1], [0], [0], [1], [0, 0, 1, 1], [], []>} : vector<2x64xbf16>, vector<64x256xbf16>, vector<2x256xf32> -> vector<2x256xf32>
    %c0_3 = arith.constant 0 : index
    %c0_4 = arith.constant 0 : index
    %3 = vector.load %arg3[%c0_3, %c0_4] : memref<1x256xf32, #tpu.memory_space<vmem>>, vector<1x256xf32>
    %4 = vector.broadcast %3 : vector<1x256xf32> to vector<2x256xf32>
    %5 = arith.addf %2, %4 : vector<2x256xf32>
    %cst_5 = arith.constant 0.000000e+00 : f32
    %6 = vector.broadcast %cst_5 : f32 to vector<2x256xf32>
    %7 = arith.maximumf %5, %6 : vector<2x256xf32>
    %8 = arith.truncf %7 : vector<2x256xf32> to vector<2x256xbf16>
    %c0_6 = arith.constant 0 : index
    %c0_7 = arith.constant 0 : index
    %9 = vector.load %arg4[%c0_6, %c0_7] : memref<256x128xbf16, #tpu.memory_space<vmem>>, vector<256x128xbf16>
    %cst_8 = arith.constant dense<0.000000e+00> : vector<2x128xf32>
    %10 = tpu.matmul %8, %9, %cst_8 {dimension_numbers = #tpu.dot_dimension_numbers<[1], [0], [0], [1], [0, 0, 1, 1], [], []>} : vector<2x256xbf16>, vector<256x128xbf16>, vector<2x128xf32> -> vector<2x128xf32>
    %c0_9 = arith.constant 0 : index
    %c0_10 = arith.constant 0 : index
    %11 = vector.load %arg5[%c0_9, %c0_10] : memref<1x128xf32, #tpu.memory_space<vmem>>, vector<1x128xf32>
    %12 = vector.broadcast %11 : vector<1x128xf32> to vector<2x128xf32>
    %13 = arith.addf %10, %12 : vector<2x128xf32>
    %c0_11 = arith.constant 0 : index
    %c0_12 = arith.constant 0 : index
    %14 = vector.load %arg6[%c0_11, %c0_12] : memref<2x128xf32, #tpu.memory_space<vmem>>, vector<2x128xf32>
    tpu.vector_store %arg6[%c0_11, %c0_12], %13 {strides = array<i32>} : memref<2x128xf32, #tpu.memory_space<vmem>>, vector<2x128xf32>,
    return
  }
  func.func @transform_0(%arg0: i32) -> (i32, i32) {
    %c0_i32 = arith.constant 0 : i32
    %c0_i32_0 = arith.constant 0 : i32
    return %arg0, %c0_i32 : i32, i32
  }
  func.func @transform_1(%arg0: i32) -> (i32, i32) {
    %c0_i32 = arith.constant 0 : i32
    %c0_i32_0 = arith.constant 0 : i32
    %c0_i32_1 = arith.constant 0 : i32
    return %c0_i32, %c0_i32_0 : i32, i32
  }
  func.func @transform_2(%arg0: i32) -> (i32, i32) {
    %c0_i32 = arith.constant 0 : i32
    %c0_i32_0 = arith.constant 0 : i32
    %c0_i32_1 = arith.constant 0 : i32
    return %c0_i32, %c0_i32_0 : i32, i32
  }
  func.func @transform_3(%arg0: i32) -> (i32, i32) {
    %c0_i32 = arith.constant 0 : i32
    %c0_i32_0 = arith.constant 0 : i32
    %c0_i32_1 = arith.constant 0 : i32
    return %c0_i32, %c0_i32_0 : i32, i32
  }
  func.func @transform_4(%arg0: i32) -> (i32, i32) {
    %c0_i32 = arith.constant 0 : i32
    %c0_i32_0 = arith.constant 0 : i32
    %c0_i32_1 = arith.constant 0 : i32
    return %c0_i32, %c0_i32_0 : i32, i32
  }
  func.func @transform_5(%arg0: i32) -> (i32, i32) {
    %c0_i32 = arith.constant 0 : i32
    %c0_i32_0 = arith.constant 0 : i32
    return %arg0, %c0_i32 : i32, i32
  }
}

</mosaic_0001>

<llo_original>
// kernel: tpu_custom_call.1
$region0: #{tpu_custom_call.1}
  #allocation0 [shape = 'u32[]', space=smem, size = 0x4, offset = 0x4, fixed_abs, tag = 'smem constant byte address 0x4 - core index']
  #allocation1 [shape = 'u32[72,128]{1,0:T(1,128)}', space=vmem, size = 0x9000, scoped, tag = 'internal scratch']
  %s0 = inlined_call_operand.hbm [shape: bf16[2,64], index: 0, kind: input, shape index: {}]
  %s1 = inlined_call_operand.hbm [shape: bf16[64,256], index: 1, kind: input, shape index: {}]
  %s2 = inlined_call_operand.hbm [shape: f32[1,256], index: 2, kind: input, shape index: {}]
  %s3 = inlined_call_operand.hbm [shape: bf16[256,128], index: 3, kind: input, shape index: {}]
  %s4 = inlined_call_operand.vmem [shape: f32[1,128], index: 4, kind: input, shape index: {}]
  %s5 = inlined_call_operand.hbm [shape: f32[2,128], index: 5, kind: output, shape index: {}]
  %s6 = sld [smem:[#allocation0]]
  $region46: #{tpu_custom_call.1} parent=0
    _
  %s8 = ssub.s32 1, %s6
  %s9 = scalar_select 0, %s8, %s6
  $region1: #{tpu_custom_call.1} parent=0
    #allocation2 [shape = 'u8[512]{0}', space=vmem, size = 0x400, scoped, tag = 'input window, operand 0, single buffered']
    #allocation3 [shape = 's32[1]{0}', space=sflag, size = 0x4, scoped, tag = 'scoped memory for tpu_custom_call.1']
    #allocation4 [shape = 's32[1]{0}', space=sflag, size = 0x4, scoped, tag = 'scoped memory for tpu_custom_call.1']
    #allocation5 [shape = 'u8[32768]{0}', space=vmem, size = 0x8000, scoped, tag = 'input window, operand 1, single buffered']
    #allocation6 [shape = 's32[1]{0}', space=sflag, size = 0x4, scoped, tag = 'scoped memory for tpu_custom_call.1']
    #allocation7 [shape = 'u8[1024]{0}', space=vmem, size = 0x400, scoped, tag = 'input window, operand 2, single buffered']
    #allocation8 [shape = 'u8[65536]{0}', space=vmem, size = 0x10000, scoped, tag = 'input window, operand 3, single buffered']
    #allocation9 [shape = 's32[1]{0}', space=sflag, size = 0x4, scoped, tag = 'scoped memory for tpu_custom_call.1']
    #allocation10 [shape = 'u8[1024]{0}', space=vmem, size = 0x400, scoped, tag = 'output window, operand 0, single buffered']
    %10 = vsyncpa [#allocation3], 0
    %11 = vsyncpa [#allocation6], 0
    %12 = vsyncpa [#allocation9], 0
    %13 = vsyncpa [#allocation4], 0
    // Predicated region
    $region2: #{tpu_custom_call.1} parent=1 // pred_check
      _
    $region3: #{tpu_custom_call.1} parent=1 // pred_check_branch
      %15 = sbr.rel (0) target = $region5
    $region4: #{tpu_custom_call.1} parent=1 // pred_region
      %17 = vsyncadd [#allocation3], 0
      %s19 = sshll.u32 %s0, 4
      %s20 = int_to_ptr.hbm [resolvable:$true] %s19
      %s21 = sshll.u32 [#allocation2], 4
      %s22 = int_to_ptr.vmem [resolvable:$true] %s21
      %24 = dma.hbm_to_vmem [thread:$0]  %s20, 16, %s22, [#allocation3]
    $region5: #{tpu_custom_call.1} parent=1 // pred_fallthru
      _
    // Predicated region
    $region6: #{tpu_custom_call.1} parent=1 // pred_check
      _
    $region7: #{tpu_custom_call.1} parent=1 // pred_check_branch
      %26 = sbr.rel (0) target = $region9
    $region8: #{tpu_custom_call.1} parent=1 // pred_region
      %28 = vsyncadd [#allocation6], 0
      %s29 = sshll.u32 %s1, 4
      %s30 = int_to_ptr.hbm [resolvable:$true] %s29
      %s31 = sshll.u32 [#allocation5], 4
      %s32 = int_to_ptr.vmem [resolvable:$true] %s31
      %37 = dma.hbm_to_vmem [thread:$0]  %s30, 1024, %s32, [#allocation6], 128, 128, 8
    $region9: #{tpu_custom_call.1} parent=1 // pred_fallthru
      _
    // Predicated region
    $region10: #{tpu_custom_call.1} parent=1 // pred_check
      _
    $region11: #{tpu_custom_call.1} parent=1 // pred_check_branch
      %39 = sbr.rel (0) target = $region13
    $region12: #{tpu_custom_call.1} parent=1 // pred_region
      %41 = vsyncadd [#allocation6], 0
      %s43 = sshll.u32 %s2, 4
      %s44 = int_to_ptr.hbm [resolvable:$true] %s43
      %s45 = sshll.u32 [#allocation7], 4
      %s46 = int_to_ptr.vmem [resolvable:$true] %s45
      %48 = dma.hbm_to_vmem [thread:$0]  %s44, 32, %s46, [#allocation6]
    $region13: #{tpu_custom_call.1} parent=1 // pred_fallthru
      _
    // Predicated region
    $region14: #{tpu_custom_call.1} parent=1 // pred_check
      _
    $region15: #{tpu_custom_call.1} parent=1 // pred_check_branch
      %50 = sbr.rel (0) target = $region17
    $region16: #{tpu_custom_call.1} parent=1 // pred_region
      %52 = vsyncadd [#allocation9], 0
      %s53 = sshll.u32 %s3, 4
      %s54 = int_to_ptr.hbm [resolvable:$true] %s53
      %s55 = sshll.u32 [#allocation8], 4
      %s56 = int_to_ptr.vmem [resolvable:$true] %s55
      %61 = dma.hbm_to_vmem [thread:$0]  %s54, 2048, %s56, [#allocation9], 64, 64, 4
    $region17: #{tpu_custom_call.1} parent=1 // pred_fallthru
      _
    // Predicated region
    $region18: #{tpu_custom_call.1} parent=1 // pred_check
      _
    $region19: #{tpu_custom_call.1} parent=1 // pred_check_branch
      %63 = sbr.rel (0) target = $region21
    $region20: #{tpu_custom_call.1} parent=1 // pred_region
      _
    $region21: #{tpu_custom_call.1} parent=1 // pred_fallthru
      _
    // Predicated region
    $region22: #{tpu_custom_call.1} parent=1 // pred_check
      _
    $region23: #{tpu_custom_call.1} parent=1 // pred_check_branch
      %65 = sbr.rel (0) target = $region25
    $region24: #{tpu_custom_call.1} parent=1 // pred_region
      %67 = dma.done [#allocation3], 16
    $region25: #{tpu_custom_call.1} parent=1 // pred_fallthru
      _
    // Predicated region
    $region26: #{tpu_custom_call.1} parent=1 // pred_check
      _
    $region27: #{tpu_custom_call.1} parent=1 // pred_check_branch
      %69 = sbr.rel (0) target = $region29
    $region28: #{tpu_custom_call.1} parent=1 // pred_region
      %71 = dma.done [#allocation6], 1024
    $region29: #{tpu_custom_call.1} parent=1 // pred_fallthru
      _
    // Predicated region
    $region30: #{tpu_custom_call.1} parent=1 // pred_check
      _
    $region31: #{tpu_custom_call.1} parent=1 // pred_check_branch
      %73 = sbr.rel (0) target = $region33
    $region32: #{tpu_custom_call.1} parent=1 // pred_region
      %75 = dma.done [#allocation6], 32
    $region33: #{tpu_custom_call.1} parent=1 // pred_fallthru
      _
    // Predicated region
    $region34: #{tpu_custom_call.1} parent=1 // pred_check
      _
    $region35: #{tpu_custom_call.1} parent=1 // pred_check_branch
      %77 = sbr.rel (0) target = $region37
    $region36: #{tpu_custom_call.1} parent=1 // pred_region
      %79 = dma.done [#allocation9], 2048
    $region37: #{tpu_custom_call.1} parent=1 // pred_fallthru
      _
    %v81 = vld [vmem:[#allocation2] sm:$0x1]
    %v82 = vld [vmem:[#allocation5] sm:$0xff]
    %v83 = vld [vmem:[#allocation5 + $0x8] sm:$0xff]
    %v84 = vld [vmem:[#allocation5 + $0x10] sm:$0xff]
    %v85 = vld [vmem:[#allocation5 + $0x18] sm:$0xff]
    %v86 = vld [vmem:[#allocation5 + $0x20] sm:$0xff]
    %v87 = vld [vmem:[#allocation5 + $0x28] sm:$0xff]
    %v88 = vld [vmem:[#allocation5 + $0x30] sm:$0xff]
    %v89 = vld [vmem:[#allocation5 + $0x38] sm:$0xff]
    %v90 = vld [vmem:[#allocation7] sm:$0x3]
    %v92 = vperm.slane %v90, 0
    %v93 = vperm.slane %v90, 1
    %v104 = vunpack.c.l.b16 %v82
    %v105 = vunpack.c.h.b16 %v82
    %v106 = vunpack.c.l.b16 %v83
    %v107 = vunpack.c.h.b16 %v83
    %v108 = vunpack.c.l.b16 %v84
    %v109 = vunpack.c.h.b16 %v84
    %v110 = vunpack.c.l.b16 %v85
    %v111 = vunpack.c.h.b16 %v85
    %v112 = vunpack.c.l.b16 %v86
    %v113 = vunpack.c.h.b16 %v86
    %v114 = vunpack.c.l.b16 %v87
    %v115 = vunpack.c.h.b16 %v87
    %v116 = vunpack.c.l.b16 %v88
    %v117 = vunpack.c.h.b16 %v88
    %v118 = vunpack.c.l.b16 %v89
    %v119 = vunpack.c.h.b16 %v89
    %v120 = vpack.c.b16 %v106, %v104
    %v121 = vpack.c.b16 %v107, %v105
    %v122 = vpack.c.b16 %v110, %v108
    %v123 = vpack.c.b16 %v111, %v109
    %v124 = vpack.c.b16 %v114, %v112
    %v125 = vpack.c.b16 %v115, %v113
    %v126 = vpack.c.b16 %v118, %v116
    %v127 = vpack.c.b16 %v119, %v117
    %vm136 = vcmask 523264
    %v138 = vsel %vm136, %v81, 0
    %140 = vmatpush.bf16.msra.mxu0 0
    %141 = vmatpush.bf16.msra.mxu0 0
    %142 = vmatpush.bf16.msra.mxu0 0
    %143 = vmatpush.bf16.msra.mxu0 0
    %144 = vmatpush.bf16.msra.mxu0 %v126
    %145 = vmatpush.bf16.msra.mxu0 %v124
    %146 = vmatpush.bf16.msra.mxu0 %v122
    %147 = vmatpush.bf16.msra.mxu0 %v120
    %148 = vmatmul.bf16.gmra.mxu0 %v138
    %v149 = vpop.f32.mrf.mxu0
    %v150 = vadd.f32 %v92, %v149
    %v151 = vpop.f32.mrf.mxu0
    %152 = vdwg.mxu0
    %153 = vmatpush.bf16.msra.mxu0 0
    %154 = vmatpush.bf16.msra.mxu0 0
    %155 = vmatpush.bf16.msra.mxu0 0
    %156 = vmatpush.bf16.msra.mxu0 0
    %157 = vmatpush.bf16.msra.mxu0 %v127
    %158 = vmatpush.bf16.msra.mxu0 %v125
    %159 = vmatpush.bf16.msra.mxu0 %v123
    %160 = vmatpush.bf16.msra.mxu0 %v121
    %161 = vmatmul.bf16.gmra.mxu0 %v138
    %v162 = vpop.f32.mrf.mxu0
    %v163 = vadd.f32 %v93, %v162
    %v164 = vpop.f32.mrf.mxu0
    %165 = vdwg.mxu0
    %v166 = vmax.f32 %v150, 0.0
    %v167 = vmax.f32 %v163, 0.0
    %v168 = vpack.c.bf16 %v166, %v166
    %v169 = vpack.c.bf16 %v167, %v167
    %v170 = vld [vmem:[#allocation8] sm:$0xf]
    %v171 = vld [vmem:[#allocation8 + $0x4] sm:$0xf]
    %v172 = vld [vmem:[#allocation8 + $0x8] sm:$0xf]
    %v173 = vld [vmem:[#allocation8 + $0xc] sm:$0xf]
    %v174 = vld [vmem:[#allocation8 + $0x10] sm:$0xf]
    %v175 = vld [vmem:[#allocation8 + $0x14] sm:$0xf]
    %v176 = vld [vmem:[#allocation8 + $0x18] sm:$0xf]
    %v177 = vld [vmem:[#allocation8 + $0x1c] sm:$0xf]
    %v178 = vld [vmem:[#allocation8 + $0x20] sm:$0xf]
    %v179 = vld [vmem:[#allocation8 + $0x24] sm:$0xf]
    %v180 = vld [vmem:[#allocation8 + $0x28] sm:$0xf]
    %v181 = vld [vmem:[#allocation8 + $0x2c] sm:$0xf]
    %v182 = vld [vmem:[#allocation8 + $0x30] sm:$0xf]
    %v183 = vld [vmem:[#allocation8 + $0x34] sm:$0xf]
    %v184 = vld [vmem:[#allocation8 + $0x38] sm:$0xf]
    %v185 = vld [vmem:[#allocation8 + $0x3c] sm:$0xf]
    %v186 = vld [vmem:[#allocation8 + $0x40] sm:$0xf]
    %v187 = vld [vmem:[#allocation8 + $0x44] sm:$0xf]
    %v188 = vld [vmem:[#allocation8 + $0x48] sm:$0xf]
    %v189 = vld [vmem:[#allocation8 + $0x4c] sm:$0xf]
    %v190 = vld [vmem:[#allocation8 + $0x50] sm:$0xf]
    %v191 = vld [vmem:[#allocation8 + $0x54] sm:$0xf]
    %v192 = vld [vmem:[#allocation8 + $0x58] sm:$0xf]
    %v193 = vld [vmem:[#allocation8 + $0x5c] sm:$0xf]
    %v194 = vld [vmem:[#allocation8 + $0x60] sm:$0xf]
    %v195 = vld [vmem:[#allocation8 + $0x64] sm:$0xf]
    %v196 = vld [vmem:[#allocation8 + $0x68] sm:$0xf]
    %v197 = vld [vmem:[#allocation8 + $0x6c] sm:$0xf]
    %v198 = vld [vmem:[#allocation8 + $0x70] sm:$0xf]
    %v199 = vld [vmem:[#allocation8 + $0x74] sm:$0xf]
    %v200 = vld [vmem:[#allocation8 + $0x78] sm:$0xf]
    %v201 = vld [vmem:[#allocation8 + $0x7c] sm:$0xf]
    %v202 = vld [vmem:[%s4] sm:$0x1]
    %v204 = vperm.slane %v202, 0
    %v238 = vunpack.c.l.b16 %v170
    %v239 = vunpack.c.l.b16 %v171
    %v240 = vunpack.c.l.b16 %v172
    %v241 = vunpack.c.l.b16 %v173
    %v242 = vunpack.c.l.b16 %v174
    %v243 = vunpack.c.l.b16 %v175
    %v244 = vunpack.c.l.b16 %v176
    %v245 = vunpack.c.l.b16 %v177
    %v246 = vunpack.c.l.b16 %v178
    %v247 = vunpack.c.l.b16 %v179
    %v248 = vunpack.c.l.b16 %v180
    %v249 = vunpack.c.l.b16 %v181
    %v250 = vunpack.c.l.b16 %v182
    %v251 = vunpack.c.l.b16 %v183
    %v252 = vunpack.c.l.b16 %v184
    %v253 = vunpack.c.l.b16 %v185
    %v254 = vunpack.c.l.b16 %v186
    %v255 = vunpack.c.l.b16 %v187
    %v256 = vunpack.c.l.b16 %v188
    %v257 = vunpack.c.l.b16 %v189
    %v258 = vunpack.c.l.b16 %v190
    %v259 = vunpack.c.l.b16 %v191
    %v260 = vunpack.c.l.b16 %v192
    %v261 = vunpack.c.l.b16 %v193
    %v262 = vunpack.c.l.b16 %v194
    %v263 = vunpack.c.l.b16 %v195
    %v264 = vunpack.c.l.b16 %v196
    %v265 = vunpack.c.l.b16 %v197
    %v266 = vunpack.c.l.b16 %v198
    %v267 = vunpack.c.l.b16 %v199
    %v268 = vunpack.c.l.b16 %v200
    %v269 = vunpack.c.l.b16 %v201
    %v270 = vpack.c.b16 %v239, %v238
    %v271 = vpack.c.b16 %v241, %v240
    %v272 = vpack.c.b16 %v243, %v242
    %v273 = vpack.c.b16 %v245, %v244
    %v274 = vpack.c.b16 %v247, %v246
    %v275 = vpack.c.b16 %v249, %v248
    %v276 = vpack.c.b16 %v251, %v250
    %v277 = vpack.c.b16 %v253, %v252
    %v278 = vpack.c.b16 %v255, %v254
    %v279 = vpack.c.b16 %v257, %v256
    %v280 = vpack.c.b16 %v259, %v258
    %v281 = vpack.c.b16 %v261, %v260
    %v282 = vpack.c.b16 %v263, %v262
    %v283 = vpack.c.b16 %v265, %v264
    %v284 = vpack.c.b16 %v267, %v266
    %v285 = vpack.c.b16 %v269, %v268
    %302 = vmatpush.bf16.msra.mxu0 %v277
    %303 = vmatpush.bf16.msra.mxu0 %v276
    %304 = vmatpush.bf16.msra.mxu0 %v275
    %305 = vmatpush.bf16.msra.mxu0 %v274
    %306 = vmatpush.bf16.msra.mxu0 %v273
    %307 = vmatpush.bf16.msra.mxu0 %v272
    %308 = vmatpush.bf16.msra.mxu0 %v271
    %309 = vmatpush.bf16.msra.mxu0 %v270
    %310 = vmatmul.bf16.gmra.mxu0 %v168
    %v311 = vpop.f32.mrf.mxu0
    %v312 = vadd.f32 %v204, %v311
    %v313 = vpop.f32.mrf.mxu0
    %314 = vdwg.mxu0
    %315 = vmatpush.bf16.msra.mxu0 %v285
    %316 = vmatpush.bf16.msra.mxu0 %v284
    %317 = vmatpush.bf16.msra.mxu0 %v283
    %318 = vmatpush.bf16.msra.mxu0 %v282
    %319 = vmatpush.bf16.msra.mxu0 %v281
    %320 = vmatpush.bf16.msra.mxu0 %v280
    %321 = vmatpush.bf16.msra.mxu0 %v279
    %322 = vmatpush.bf16.msra.mxu0 %v278
    %323 = vmatmul.bf16.gmra.mxu0 %v169
    %v324 = vpop.f32.mrf.mxu0
    %v325 = vadd.f32 %v312, %v324
    %v326 = vpop.f32.mrf.mxu0
    %327 = vdwg.mxu0
    %328 = vst [vmem:[#allocation10] sm:$0x3] %v325
    // Predicated region
    $region38: #{tpu_custom_call.1} parent=1 // pred_check
      _
    $region39: #{tpu_custom_call.1} parent=1 // pred_check_branch
      %330 = sbr.rel (0) target = $region41
    $region40: #{tpu_custom_call.1} parent=1 // pred_region
      %332 = vsyncadd [#allocation4], 0
      %s334 = sshll.u32 [#allocation10], 4
      %s335 = int_to_ptr.vmem [resolvable:$true] %s334
      %s336 = sshll.u32 %s5, 4
      %s337 = int_to_ptr.hbm [resolvable:$true] %s336
      %339 = dma.vmem_to_hbm [thread:$0]  %s335, 32, %s337, [#allocation4]
    $region41: #{tpu_custom_call.1} parent=1 // pred_fallthru
      _
    // Predicated region
    $region42: #{tpu_custom_call.1} parent=1 // pred_check
      _
    $region43: #{tpu_custom_call.1} parent=1 // pred_check_branch
      %341 = sbr.rel (0) target = $region45
    $region44: #{tpu_custom_call.1} parent=1 // pred_region
      %343 = dma.done [#allocation4], 32
    $region45: #{tpu_custom_call.1} parent=1 // pred_fallthru
      _
    %344 = vsyncpa [#allocation3], 1
    %345 = vsyncpa [#allocation6], 1
    %346 = vsyncpa [#allocation9], 1
    %347 = vsyncpa [#allocation4], 1

</llo_original>
